<compile_context>
chip_gen: v6e
topology: v6e:2x2x1
jax: 0.10.0
libtpu: 0.0.40
codegen_flags: <defaults>
</compile_context>

<pallas_src>
import jax
import jax.numpy as jnp
from jax.experimental import pallas as pl
from jax.experimental.pallas import tpu as pltpu


def _proj_kernel(x_ref, w0_ref, b0_ref, w1_ref, b1_ref, o_ref):
    # In-kernel cast of x to the MXU compute dtype (no-op when dtypes already match).
    x = x_ref[...].astype(w0_ref.dtype)
    h = jnp.dot(x, w0_ref[...], preferred_element_type=jnp.float32) + b0_ref[...]
    # NOTE: the hidden activation is handed to the second matmul in the weight compute
    # dtype (bf16 on the fast path). Accumulation is f32; this hand-off is the dominant
    # error term vs the f32 reference. Use compute_dtype=jnp.float32 for exactness.
    h = h.astype(w1_ref.dtype)
    y = jnp.dot(h, w1_ref[...], preferred_element_type=jnp.float32) + b1_ref[...]
    o_ref[...] = jax.nn.sigmoid(y).astype(o_ref.dtype)


def _round_up(v, m):
    return ((v + m - 1) // m) * m


def _auto_tile_b(batch):
    """Batch tile: fill the MXU M dim, guarantee >=2 tiles (v7x dual TensorCore),
    keep 128-alignment (v5e MXU), cap at 1024 rows (VMEM-safe on v7x's 64 MiB)."""
    if batch <= 128:
        return batch                                 # single full-dim tile
    tile = _round_up(pl.cdiv(batch, 2), 128)         # >= 2 tiles, 128-aligned
    return max(128, min(tile, 1024))


def prepare_proj_params(w0, b0, w1, b1, compute_dtype=jnp.bfloat16):
    """One-time parameter prep: transpose nn.Linear (out, in) weights to row-major
    (K, N) and cast to the MXU compute dtype. Call once per model, NOT per forward."""
    return (
        w0.T.astype(compute_dtype),                  # (in_dim, 512)
        b0.reshape(1, -1).astype(jnp.float32),       # (1, 512)
        w1.T.astype(compute_dtype),                  # (512, out_dim)
        b1.reshape(1, -1).astype(jnp.float32),       # (1, out_dim)
    )


def proj_forward(x, w0_t, b0_2d, w1_t, b1_2d, *, tile_b=None, out_dtype=None):
    """Proj forward pass.

    x:     (B, in_dim) in its native dtype (cast to compute dtype happens in-kernel)
    w0_t:  (in_dim, 512), w1_t: (512, out_dim)  -- from prepare_proj_params
    b0_2d: (1, 512),      b1_2d: (1, out_dim)   -- f32 biases
    """
    B, in_dim = x.shape
    hid = w0_t.shape[1]
    out_dim = w1_t.shape[1]
    if out_dtype is None:
        out_dtype = x.dtype
    if tile_b is None:
        tile_b = _auto_tile_b(B)
    tile_b = min(tile_b, B)

    num_tiles = pl.cdiv(B, tile_b)
    grid = (num_tiles,)

    # Accurate advisory cost for XLA's scheduler around the custom call.
    w_itemsize = jnp.dtype(w0_t.dtype).itemsize
    flops = 2 * B * (in_dim * hid + hid * out_dim)
    bytes_accessed = (
        B * in_dim * jnp.dtype(x.dtype).itemsize         # x, single pass, native dtype
        + in_dim * hid * w_itemsize                      # W0^T
        + hid * out_dim * w_itemsize                     # W1^T
        + (hid + out_dim) * 4                            # biases (f32)
        + B * out_dim * jnp.dtype(out_dtype).itemsize    # output
    )
    cost = pl.CostEstimate(
        flops=flops,
        transcendentals=2 * B * out_dim,                 # sigmoid ~ exp + reciprocal
        bytes_accessed=int(bytes_accessed),
    )

    # Constant index_map + Buffered(1): weights/biases stay VMEM-resident, no per-step
    # weight DMAs and no second VMEM buffer.
    resident = pl.Buffered(1)
    if num_tiles >= 4:
        # Streaming regime: 3-deep input buffer hides the DMA ramp (one extra x tile).
        x_spec = pl.BlockSpec((tile_b, in_dim), lambda i: (i, 0),
                              pipeline_mode=pl.Buffered(3))
    else:
        x_spec = pl.BlockSpec((tile_b, in_dim), lambda i: (i, 0))

    return pl.pallas_call(
        _proj_kernel,
        out_shape=jax.ShapeDtypeStruct((B, out_dim), out_dtype),
        grid_spec=pltpu.PrefetchScalarGridSpec(
            num_scalar_prefetch=0,
            grid=grid,
            in_specs=[
                x_spec,                                                         # x tile
                pl.BlockSpec((in_dim, hid), lambda i: (0, 0),
                             pipeline_mode=resident),                           # W0^T
                pl.BlockSpec((1, hid), lambda i: (0, 0),
                             pipeline_mode=resident),                           # b0
                pl.BlockSpec((hid, out_dim), lambda i: (0, 0),
                             pipeline_mode=resident),                           # W1^T
                pl.BlockSpec((1, out_dim), lambda i: (0, 0),
                             pipeline_mode=resident),                           # b1
            ],
            out_specs=pl.BlockSpec((tile_b, out_dim), lambda i: (i, 0)),        # lane-dense
        ),
        compiler_params=pltpu.CompilerParams(
            dimension_semantics=("parallel",),
            # Explicit budget: v5e scoped default is only 16 MiB; 32 MiB is safe on
            # v7x (64 MiB physical) with <= 1024-row tiles.
            vmem_limit_bytes=32 * 1024 * 1024,
        ),
        cost_estimate=cost,
    )(x, w0_t, b0_2d, w1_t, b1_2d)


if __name__ == "__main__":
    in_dim, hid, out_dim = 256, 512, 256   # Proj(in_dim=256, out_dim=256); hidden fixed at 512
    B = 64

    key = jax.random.PRNGKey(0)
    kx, kw0, kb0, kw1, kb1 = jax.random.split(key, 5)

    # Deterministic synthetic params (nn.Linear layout: weight is (out_features, in_features))
    w0 = jax.random.normal(kw0, (hid, in_dim), dtype=jnp.float32) * 0.02
    b0 = jax.random.normal(kb0, (hid,), dtype=jnp.float32) * 0.01
    w1 = jax.random.normal(kw1, (out_dim, hid), dtype=jnp.float32) * 0.02
    b1 = jax.random.normal(kb1, (out_dim,), dtype=jnp.float32) * 0.01

    x = jax.random.normal(kx, (B, in_dim), dtype=jnp.float32)

    # Pure-JAX reference
    ref = jax.nn.sigmoid((x @ w0.T + b0) @ w1.T + b1)

    # 1) f32 compute path: tight numerical check of the kernel structure.
    p_f32 = prepare_proj_params(w0, b0, w1, b1, compute_dtype=jnp.float32)
    out_f32 = jax.block_until_ready(proj_forward(x, *p_f32))
    assert out_f32.shape == (B, out_dim)
    assert jnp.allclose(out_f32, ref, atol=1e-5, rtol=1e-5), "f32 path mismatch vs reference"

    # 2) bf16 fast path: weights prepped once, in-kernel x cast, bf16 output
    #    (halves the dominant HBM write; out_dim=256 keeps stores lane-dense).
    p_bf16 = prepare_proj_params(w0, b0, w1, b1, compute_dtype=jnp.bfloat16)
    out_bf16 = jax.block_until_ready(
        proj_forward(x, *p_bf16, out_dtype=jnp.bfloat16)
    )
    assert out_bf16.shape == (B, out_dim)
    assert jnp.allclose(out_bf16.astype(jnp.float32), ref, atol=2e-2, rtol=2e-2), \
        "bf16 path mismatch vs reference"

    print("KERNEL_OK")
</pallas_src>

<mosaic_0001>
module attributes {stable_mosaic.version = 11 : i64} {
  func.func @_proj_kernel(%arg0: i32, %arg1: memref<64x256xf32, #tpu.memory_space<vmem>>, %arg2: memref<256x512xf32, #tpu.memory_space<vmem>>, %arg3: memref<1x512xf32, #tpu.memory_space<vmem>>, %arg4: memref<512x256xf32, #tpu.memory_space<vmem>>, %arg5: memref<1x256xf32, #tpu.memory_space<vmem>>, %arg6: memref<64x256xf32, #tpu.memory_space<vmem>>) attributes {dimension_semantics = [#tpu.dimension_semantics<parallel>], iteration_bounds = array<i64: 1>, scalar_prefetch = 0 : i64, scratch_operands = 0 : i64, tpu.core_type = #tpu.core_type<tc>, window_params = [{transform_indices = @transform_0, window_bounds = array<i64: 64, 256>}, {pipeline_mode = #tpu.pipeline_mode<synchronous>, transform_indices = @transform_1, window_bounds = array<i64: 256, 512>}, {pipeline_mode = #tpu.pipeline_mode<synchronous>, transform_indices = @transform_2, window_bounds = array<i64: 1, 512>}, {pipeline_mode = #tpu.pipeline_mode<synchronous>, transform_indices = @transform_3, window_bounds = array<i64: 512, 256>}, {pipeline_mode = #tpu.pipeline_mode<synchronous>, transform_indices = @transform_4, window_bounds = array<i64: 1, 256>}, {transform_indices = @transform_5, window_bounds = array<i64: 64, 256>}]} {
    %c0 = arith.constant 0 : index
    %c0_0 = arith.constant 0 : index
    %0 = vector.load %arg1[%c0, %c0_0] : memref<64x256xf32, #tpu.memory_space<vmem>>, vector<64x256xf32>
    %c0_1 = arith.constant 0 : index
    %c0_2 = arith.constant 0 : index
    %1 = vector.load %arg2[%c0_1, %c0_2] : memref<256x512xf32, #tpu.memory_space<vmem>>, vector<256x512xf32>
    %cst = arith.constant dense<0.000000e+00> : vector<64x512xf32>
    %2 = tpu.matmul %0, %1, %cst {dimension_numbers = #tpu.dot_dimension_numbers<[1], [0], [0], [1], [0, 0, 1, 1], [], []>} : vector<64x256xf32>, vector<256x512xf32>, vector<64x512xf32> -> vector<64x512xf32>
    %c0_3 = arith.constant 0 : index
    %c0_4 = arith.constant 0 : index
    %3 = vector.load %arg3[%c0_3, %c0_4] : memref<1x512xf32, #tpu.memory_space<vmem>>, vector<1x512xf32>
    %4 = vector.broadcast %3 : vector<1x512xf32> to vector<64x512xf32>
    %5 = arith.addf %2, %4 : vector<64x512xf32>
    %c0_5 = arith.constant 0 : index
    %c0_6 = arith.constant 0 : index
    %6 = vector.load %arg4[%c0_5, %c0_6] : memref<512x256xf32, #tpu.memory_space<vmem>>, vector<512x256xf32>
    %cst_7 = arith.constant dense<0.000000e+00> : vector<64x256xf32>
    %7 = tpu.matmul %5, %6, %cst_7 {dimension_numbers = #tpu.dot_dimension_numbers<[1], [0], [0], [1], [0, 0, 1, 1], [], []>} : vector<64x512xf32>, vector<512x256xf32>, vector<64x256xf32> -> vector<64x256xf32>
    %c0_8 = arith.constant 0 : index
    %c0_9 = arith.constant 0 : index
    %8 = vector.load %arg5[%c0_8, %c0_9] : memref<1x256xf32, #tpu.memory_space<vmem>>, vector<1x256xf32>
    %9 = vector.broadcast %8 : vector<1x256xf32> to vector<64x256xf32>
    %10 = arith.addf %7, %9 : vector<64x256xf32>
    %11 = arith.negf %10 : vector<64x256xf32>
    %12 = math.exp %11 : vector<64x256xf32>
    %cst_10 = arith.constant 1.000000e+00 : f32
    %13 = vector.broadcast %cst_10 : f32 to vector<64x256xf32>
    %14 = arith.addf %13, %12 : vector<64x256xf32>
    %15 = arith.divf %13, %14 : vector<64x256xf32>
    %c0_11 = arith.constant 0 : index
    %c0_12 = arith.constant 0 : index
    %16 = vector.load %arg6[%c0_11, %c0_12] : memref<64x256xf32, #tpu.memory_space<vmem>>, vector<64x256xf32>
    tpu.vector_store %arg6[%c0_11, %c0_12], %15 {strides = array<i32>} : memref<64x256xf32, #tpu.memory_space<vmem>>, vector<64x256xf32>,
    return
  }
  func.func @transform_0(%arg0: i32) -> (i32, i32) {
    %c0_i32 = arith.constant 0 : i32
    %c0_i32_0 = arith.constant 0 : i32
    return %arg0, %c0_i32 : i32, i32
  }
  func.func @transform_1(%arg0: i32) -> (i32, i32) {
    %c0_i32 = arith.constant 0 : i32
    %c0_i32_0 = arith.constant 0 : i32
    %c0_i32_1 = arith.constant 0 : i32
    return %c0_i32, %c0_i32_0 : i32, i32
  }
  func.func @transform_2(%arg0: i32) -> (i32, i32) {
    %c0_i32 = arith.constant 0 : i32
    %c0_i32_0 = arith.constant 0 : i32
    %c0_i32_1 = arith.constant 0 : i32
    return %c0_i32, %c0_i32_0 : i32, i32
  }
  func.func @transform_3(%arg0: i32) -> (i32, i32) {
    %c0_i32 = arith.constant 0 : i32
    %c0_i32_0 = arith.constant 0 : i32
    %c0_i32_1 = arith.constant 0 : i32
    return %c0_i32, %c0_i32_0 : i32, i32
  }
  func.func @transform_4(%arg0: i32) -> (i32, i32) {
    %c0_i32 = arith.constant 0 : i32
    %c0_i32_0 = arith.constant 0 : i32
    %c0_i32_1 = arith.constant 0 : i32
    return %c0_i32, %c0_i32_0 : i32, i32
  }
  func.func @transform_5(%arg0: i32) -> (i32, i32) {
    %c0_i32 = arith.constant 0 : i32
    %c0_i32_0 = arith.constant 0 : i32
    return %arg0, %c0_i32 : i32, i32
  }
}

</mosaic_0001>

<llo_original>
// kernel: tpu_custom_call.1
$region0: #{tpu_custom_call.1}
  #allocation0 [shape = 'u32[]', space=smem, size = 0x4, offset = 0x4, fixed_abs, tag = 'smem constant byte address 0x4 - core index']
  #allocation1 [shape = 'u32[144,128]{1,0:T(1,128)}', space=vmem, size = 0x12000, scoped, tag = 'internal scratch']
  %s0 = inlined_call_operand.hbm [shape: f32[64,256], index: 0, kind: input, shape index: {}]
  %s1 = inlined_call_operand.hbm [shape: f32[256,512], index: 1, kind: input, shape index: {}]
  %s2 = inlined_call_operand.hbm [shape: f32[1,512], index: 2, kind: input, shape index: {}]
  %s3 = inlined_call_operand.hbm [shape: f32[512,256], index: 3, kind: input, shape index: {}]
  %s4 = inlined_call_operand.vmem [shape: f32[1,256], index: 4, kind: input, shape index: {}]
  %s5 = inlined_call_operand.hbm [shape: f32[64,256], index: 5, kind: output, shape index: {}]
  %s6 = sld [smem:[#allocation0]]
  $region46: #{tpu_custom_call.1} parent=0
    _
  %s8 = ssub.s32 1, %s6
  %s9 = scalar_select 0, %s8, %s6
  $region1: #{tpu_custom_call.1} parent=0
    #allocation2 [shape = 'u8[65536]{0}', space=vmem, size = 0x10000, scoped, tag = 'input window, operand 0, single buffered']
    #allocation3 [shape = 's32[1]{0}', space=sflag, size = 0x4, scoped, tag = 'scoped memory for tpu_custom_call.1']
    #allocation4 [shape = 's32[1]{0}', space=sflag, size = 0x4, scoped, tag = 'scoped memory for tpu_custom_call.1']
    #allocation5 [shape = 'u8[524288]{0}', space=vmem, size = 0x80000, scoped, tag = 'input window, operand 1, single buffered']
    #allocation6 [shape = 's32[1]{0}', space=sflag, size = 0x4, scoped, tag = 'scoped memory for tpu_custom_call.1']
    #allocation7 [shape = 'u8[2048]{0}', space=vmem, size = 0x800, scoped, tag = 'input window, operand 2, single buffered']
    #allocation8 [shape = 'u8[524288]{0}', space=vmem, size = 0x80000, scoped, tag = 'input window, operand 3, single buffered']
    #allocation9 [shape = 's32[1]{0}', space=sflag, size = 0x4, scoped, tag = 'scoped memory for tpu_custom_call.1']
    #allocation10 [shape = 'u8[65536]{0}', space=vmem, size = 0x10000, scoped, tag = 'output window, operand 0, single buffered']
    %10 = vsyncpa [#allocation3], 0
    %11 = vsyncpa [#allocation6], 0
    %12 = vsyncpa [#allocation9], 0
    %13 = vsyncpa [#allocation4], 0
    // Predicated region
    $region2: #{tpu_custom_call.1} parent=1 // pred_check
      _
    $region3: #{tpu_custom_call.1} parent=1 // pred_check_branch
      %15 = sbr.rel (0) target = $region5
    $region4: #{tpu_custom_call.1} parent=1 // pred_region
      %s17 = ssub.s32 2048, 2048
      %18 = vsyncadd [#allocation3], %s17
      %s19 = sshll.u32 [#allocation2], 4
      %s20 = int_to_ptr.vmem [resolvable:$true] %s19
      %25 = dma.hbm_to_vmem [thread:$0]  %s0, 2048, %s20, [#allocation3], 256, 256, 16
    $region5: #{tpu_custom_call.1} parent=1 // pred_fallthru
      _
    // Predicated region
    $region6: #{tpu_custom_call.1} parent=1 // pred_check
      _
    $region7: #{tpu_custom_call.1} parent=1 // pred_check_branch
      %27 = sbr.rel (0) target = $region9
    $region8: #{tpu_custom_call.1} parent=1 // pred_region
      %s29 = ssub.s32 16384, 16384
      %30 = vsyncadd [#allocation6], %s29
      %s31 = sshll.u32 [#allocation5], 4
      %s32 = int_to_ptr.vmem [resolvable:$true] %s31
      %37 = dma.hbm_to_vmem [thread:$0]  %s1, 16384, %s32, [#allocation6], 512, 512, 32
    $region9: #{tpu_custom_call.1} parent=1 // pred_fallthru
      _
    // Predicated region
    $region10: #{tpu_custom_call.1} parent=1 // pred_check
      _
    $region11: #{tpu_custom_call.1} parent=1 // pred_check_branch
      %39 = sbr.rel (0) target = $region13
    $region12: #{tpu_custom_call.1} parent=1 // pred_region
      %s41 = ssub.s32 64, 64
      %42 = vsyncadd [#allocation6], %s41
      %s44 = sshll.u32 [#allocation7], 4
      %s45 = int_to_ptr.vmem [resolvable:$true] %s44
      %47 = dma.hbm_to_vmem [thread:$0]  %s2, 64, %s45, [#allocation6]
    $region13: #{tpu_custom_call.1} parent=1 // pred_fallthru
      _
    // Predicated region
    $region14: #{tpu_custom_call.1} parent=1 // pred_check
      _
    $region15: #{tpu_custom_call.1} parent=1 // pred_check_branch
      %49 = sbr.rel (0) target = $region17
    $region16: #{tpu_custom_call.1} parent=1 // pred_region
      %s51 = ssub.s32 16384, 16384
      %52 = vsyncadd [#allocation9], %s51
      %s53 = sshll.u32 [#allocation8], 4
      %s54 = int_to_ptr.vmem [resolvable:$true] %s53
      %59 = dma.hbm_to_vmem [thread:$0]  %s3, 16384, %s54, [#allocation9], 256, 256, 16
    $region17: #{tpu_custom_call.1} parent=1 // pred_fallthru
      _
    // Predicated region
    $region18: #{tpu_custom_call.1} parent=1 // pred_check
      _
    $region19: #{tpu_custom_call.1} parent=1 // pred_check_branch
      %61 = sbr.rel (0) target = $region21
    $region20: #{tpu_custom_call.1} parent=1 // pred_region
      _
    $region21: #{tpu_custom_call.1} parent=1 // pred_fallthru
      _
    // Predicated region
    $region22: #{tpu_custom_call.1} parent=1 // pred_check
      _
    $region23: #{tpu_custom_call.1} parent=1 // pred_check_branch
      %63 = sbr.rel (0) target = $region25
    $region24: #{tpu_custom_call.1} parent=1 // pred_region
      %64 = dma.done [#allocation3], 2048
    $region25: #{tpu_custom_call.1} parent=1 // pred_fallthru
      _
    // Predicated region
    $region26: #{tpu_custom_call.1} parent=1 // pred_check
      _
    $region27: #{tpu_custom_call.1} parent=1 // pred_check_branch
      %66 = sbr.rel (0) target = $region29
    $region28: #{tpu_custom_call.1} parent=1 // pred_region
      %67 = dma.done [#allocation6], 16384
    $region29: #{tpu_custom_call.1} parent=1 // pred_fallthru
      _
    // Predicated region
    $region30: #{tpu_custom_call.1} parent=1 // pred_check
      _
    $region31: #{tpu_custom_call.1} parent=1 // pred_check_branch
      %69 = sbr.rel (0) target = $region33
    $region32: #{tpu_custom_call.1} parent=1 // pred_region
      %70 = dma.done [#allocation6], 64
    $region33: #{tpu_custom_call.1} parent=1 // pred_fallthru
      _
    // Predicated region
    $region34: #{tpu_custom_call.1} parent=1 // pred_check
      _
    $region35: #{tpu_custom_call.1} parent=1 // pred_check_branch
      %72 = sbr.rel (0) target = $region37
    $region36: #{tpu_custom_call.1} parent=1 // pred_region
      %73 = dma.done [#allocation9], 16384
    $region37: #{tpu_custom_call.1} parent=1 // pred_fallthru
      _
    %v74 = vld [vmem:[#allocation2] sm:$0xff]
    %v75 = vld [vmem:[#allocation2 + $0x8] sm:$0xff]
    %v76 = vld [vmem:[#allocation2 + $0x10] sm:$0xff]
    %v77 = vld [vmem:[#allocation2 + $0x18] sm:$0xff]
    %v78 = vld [vmem:[#allocation2 + $0x20] sm:$0xff]
    %v79 = vld [vmem:[#allocation2 + $0x28] sm:$0xff]
    %v80 = vld [vmem:[#allocation2 + $0x30] sm:$0xff]
    %v81 = vld [vmem:[#allocation2 + $0x38] sm:$0xff]
    %v82 = vld [vmem:[#allocation2 + $0x40] sm:$0xff]
    %v83 = vld [vmem:[#allocation2 + $0x48] sm:$0xff]
    %v84 = vld [vmem:[#allocation2 + $0x50] sm:$0xff]
    %v85 = vld [vmem:[#allocation2 + $0x58] sm:$0xff]
    %v86 = vld [vmem:[#allocation2 + $0x60] sm:$0xff]
    %v87 = vld [vmem:[#allocation2 + $0x68] sm:$0xff]
    %v88 = vld [vmem:[#allocation2 + $0x70] sm:$0xff]
    %v89 = vld [vmem:[#allocation2 + $0x78] sm:$0xff]
    %v90 = vld [vmem:[#allocation5] sm:$0xff]
    %v91 = vld [vmem:[#allocation5 + $0x8] sm:$0xff]
    %v92 = vld [vmem:[#allocation5 + $0x10] sm:$0xff]
    %v93 = vld [vmem:[#allocation5 + $0x18] sm:$0xff]
    %v94 = vld [vmem:[#allocation5 + $0x20] sm:$0xff]
    %v95 = vld [vmem:[#allocation5 + $0x28] sm:$0xff]
    %v96 = vld [vmem:[#allocation5 + $0x30] sm:$0xff]
    %v97 = vld [vmem:[#allocation5 + $0x38] sm:$0xff]
    %v98 = vld [vmem:[#allocation5 + $0x40] sm:$0xff]
    %v99 = vld [vmem:[#allocation5 + $0x48] sm:$0xff]
    %v100 = vld [vmem:[#allocation5 + $0x50] sm:$0xff]
    %v101 = vld [vmem:[#allocation5 + $0x58] sm:$0xff]
    %v102 = vld [vmem:[#allocation5 + $0x60] sm:$0xff]
    %v103 = vld [vmem:[#allocation5 + $0x68] sm:$0xff]
    %v104 = vld [vmem:[#allocation5 + $0x70] sm:$0xff]
    %v105 = vld [vmem:[#allocation5 + $0x78] sm:$0xff]
    %v106 = vld [vmem:[#allocation5 + $0x80] sm:$0xff]
    %v107 = vld [vmem:[#allocation5 + $0x88] sm:$0xff]
    %v108 = vld [vmem:[#allocation5 + $0x90] sm:$0xff]
    %v109 = vld [vmem:[#allocation5 + $0x98] sm:$0xff]
    %v110 = vld [vmem:[#allocation5 + $0xa0] sm:$0xff]
    %v111 = vld [vmem:[#allocation5 + $0xa8] sm:$0xff]
    %v112 = vld [vmem:[#allocation5 + $0xb0] sm:$0xff]
    %v113 = vld [vmem:[#allocation5 + $0xb8] sm:$0xff]
    %v114 = vld [vmem:[#allocation5 + $0xc0] sm:$0xff]
    %v115 = vld [vmem:[#allocation5 + $0xc8] sm:$0xff]
    %v116 = vld [vmem:[#allocation5 + $0xd0] sm:$0xff]
    %v117 = vld [vmem:[#allocation5 + $0xd8] sm:$0xff]
    %v118 = vld [vmem:[#allocation5 + $0xe0] sm:$0xff]
    %v119 = vld [vmem:[#allocation5 + $0xe8] sm:$0xff]
    %v120 = vld [vmem:[#allocation5 + $0xf0] sm:$0xff]
    %v121 = vld [vmem:[#allocation5 + $0xf8] sm:$0xff]
    %v122 = vld [vmem:[#allocation5 + $0x100] sm:$0xff]
    %v123 = vld [vmem:[#allocation5 + $0x108] sm:$0xff]
    %v124 = vld [vmem:[#allocation5 + $0x110] sm:$0xff]
    %v125 = vld [vmem:[#allocation5 + $0x118] sm:$0xff]
    %v126 = vld [vmem:[#allocation5 + $0x120] sm:$0xff]
    %v127 = vld [vmem:[#allocation5 + $0x128] sm:$0xff]
    %v128 = vld [vmem:[#allocation5 + $0x130] sm:$0xff]
    %v129 = vld [vmem:[#allocation5 + $0x138] sm:$0xff]
    %v130 = vld [vmem:[#allocation5 + $0x140] sm:$0xff]
    %v131 = vld [vmem:[#allocation5 + $0x148] sm:$0xff]
    %v132 = vld [vmem:[#allocation5 + $0x150] sm:$0xff]
    %v133 = vld [vmem:[#allocation5 + $0x158] sm:$0xff]
    %v134 = vld [vmem:[#allocation5 + $0x160] sm:$0xff]
    %v135 = vld [vmem:[#allocation5 + $0x168] sm:$0xff]
    %v136 = vld [vmem:[#allocation5 + $0x170] sm:$0xff]
    %v137 = vld [vmem:[#allocation5 + $0x178] sm:$0xff]
    %v138 = vld [vmem:[#allocation5 + $0x180] sm:$0xff]
    %v139 = vld [vmem:[#allocation5 + $0x188] sm:$0xff]
    %v140 = vld [vmem:[#allocation5 + $0x190] sm:$0xff]
    %v141 = vld [vmem:[#allocation5 + $0x198] sm:$0xff]
    %v142 = vld [vmem:[#allocation5 + $0x1a0] sm:$0xff]
    %v143 = vld [vmem:[#allocation5 + $0x1a8] sm:$0xff]
    %v144 = vld [vmem:[#allocation5 + $0x1b0] sm:$0xff]
    %v145 = vld [vmem:[#allocation5 + $0x1b8] sm:$0xff]
    %v146 = vld [vmem:[#allocation5 + $0x1c0] sm:$0xff]
    %v147 = vld [vmem:[#allocation5 + $0x1c8] sm:$0xff]
    %v148 = vld [vmem:[#allocation5 + $0x1d0] sm:$0xff]
    %v149 = vld [vmem:[#allocation5 + $0x1d8] sm:$0xff]
    %v150 = vld [vmem:[#allocation5 + $0x1e0] sm:$0xff]
    %v151 = vld [vmem:[#allocation5 + $0x1e8] sm:$0xff]
    %v152 = vld [vmem:[#allocation5 + $0x1f0] sm:$0xff]
    %v153 = vld [vmem:[#allocation5 + $0x1f8] sm:$0xff]
    %v154 = vld [vmem:[#allocation5 + $0x200] sm:$0xff]
    %v155 = vld [vmem:[#allocation5 + $0x208] sm:$0xff]
    %v156 = vld [vmem:[#allocation5 + $0x210] sm:$0xff]
    %v157 = vld [vmem:[#allocation5 + $0x218] sm:$0xff]
    %v158 = vld [vmem:[#allocation5 + $0x220] sm:$0xff]
    %v159 = vld [vmem:[#allocation5 + $0x228] sm:$0xff]
    %v160 = vld [vmem:[#allocation5 + $0x230] sm:$0xff]
    %v161 = vld [vmem:[#allocation5 + $0x238] sm:$0xff]
    %v162 = vld [vmem:[#allocation5 + $0x240] sm:$0xff]
    %v163 = vld [vmem:[#allocation5 + $0x248] sm:$0xff]
    %v164 = vld [vmem:[#allocation5 + $0x250] sm:$0xff]
    %v165 = vld [vmem:[#allocation5 + $0x258] sm:$0xff]
    %v166 = vld [vmem:[#allocation5 + $0x260] sm:$0xff]
    %v167 = vld [vmem:[#allocation5 + $0x268] sm:$0xff]
    %v168 = vld [vmem:[#allocation5 + $0x270] sm:$0xff]
    %v169 = vld [vmem:[#allocation5 + $0x278] sm:$0xff]
    %v170 = vld [vmem:[#allocation5 + $0x280] sm:$0xff]
    %v171 = vld [vmem:[#allocation5 + $0x288] sm:$0xff]
    %v172 = vld [vmem:[#allocation5 + $0x290] sm:$0xff]
    %v173 = vld [vmem:[#allocation5 + $0x298] sm:$0xff]
    %v174 = vld [vmem:[#allocation5 + $0x2a0] sm:$0xff]
    %v175 = vld [vmem:[#allocation5 + $0x2a8] sm:$0xff]
    %v176 = vld [vmem:[#allocation5 + $0x2b0] sm:$0xff]
    %v177 = vld [vmem:[#allocation5 + $0x2b8] sm:$0xff]
    %v178 = vld [vmem:[#allocation5 + $0x2c0] sm:$0xff]
    %v179 = vld [vmem:[#allocation5 + $0x2c8] sm:$0xff]
    %v180 = vld [vmem:[#allocation5 + $0x2d0] sm:$0xff]
    %v181 = vld [vmem:[#allocation5 + $0x2d8] sm:$0xff]
    %v182 = vld [vmem:[#allocation5 + $0x2e0] sm:$0xff]
    %v183 = vld [vmem:[#allocation5 + $0x2e8] sm:$0xff]
    %v184 = vld [vmem:[#allocation5 + $0x2f0] sm:$0xff]
    %v185 = vld [vmem:[#allocation5 + $0x2f8] sm:$0xff]
    %v186 = vld [vmem:[#allocation5 + $0x300] sm:$0xff]
    %v187 = vld [vmem:[#allocation5 + $0x308] sm:$0xff]
    %v188 = vld [vmem:[#allocation5 + $0x310] sm:$0xff]
    %v189 = vld [vmem:[#allocation5 + $0x318] sm:$0xff]
    %v190 = vld [vmem:[#allocation5 + $0x320] sm:$0xff]
    %v191 = vld [vmem:[#allocation5 + $0x328] sm:$0xff]
    %v192 = vld [vmem:[#allocation5 + $0x330] sm:$0xff]
    %v193 = vld [vmem:[#allocation5 + $0x338] sm:$0xff]
    %v194 = vld [vmem:[#allocation5 + $0x340] sm:$0xff]
    %v195 = vld [vmem:[#allocation5 + $0x348] sm:$0xff]
    %v196 = vld [vmem:[#allocation5 + $0x350] sm:$0xff]
    %v197 = vld [vmem:[#allocation5 + $0x358] sm:$0xff]
    %v198 = vld [vmem:[#allocation5 + $0x360] sm:$0xff]
    %v199 = vld [vmem:[#allocation5 + $0x368] sm:$0xff]
    %v200 = vld [vmem:[#allocation5 + $0x370] sm:$0xff]
    %v201 = vld [vmem:[#allocation5 + $0x378] sm:$0xff]
    %v202 = vld [vmem:[#allocation5 + $0x380] sm:$0xff]
    %v203 = vld [vmem:[#allocation5 + $0x388] sm:$0xff]
    %v204 = vld [vmem:[#allocation5 + $0x390] sm:$0xff]
    %v205 = vld [vmem:[#allocation5 + $0x398] sm:$0xff]
    %v206 = vld [vmem:[#allocation5 + $0x3a0] sm:$0xff]
    %v207 = vld [vmem:[#allocation5 + $0x3a8] sm:$0xff]
    %v208 = vld [vmem:[#allocation5 + $0x3b0] sm:$0xff]
    %v209 = vld [vmem:[#allocation5 + $0x3b8] sm:$0xff]
    %v210 = vld [vmem:[#allocation5 + $0x3c0] sm:$0xff]
    %v211 = vld [vmem:[#allocation5 + $0x3c8] sm:$0xff]
    %v212 = vld [vmem:[#allocation5 + $0x3d0] sm:$0xff]
    %v213 = vld [vmem:[#allocation5 + $0x3d8] sm:$0xff]
    %v214 = vld [vmem:[#allocation5 + $0x3e0] sm:$0xff]
    %v215 = vld [vmem:[#allocation5 + $0x3e8] sm:$0xff]
    %v216 = vld [vmem:[#allocation5 + $0x3f0] sm:$0xff]
    %v217 = vld [vmem:[#allocation5 + $0x3f8] sm:$0xff]
    %v218 = vld [vmem:[#allocation7] sm:$0xf]
    %v220 = vlaneseq
    %v221 = vshrl.u32 %v220, 7
    %v222 = vsub.s32 0, %v221
    %v223 = vrot.slane %v218, %v222
    %v224 = vlaneseq
    %v225 = vshrl.u32 %v224, 7
    %v226 = vsub.s32 1, %v225
    %v227 = vrot.slane %v218, %v226
    %v228 = vlaneseq
    %v229 = vshrl.u32 %v228, 7
    %v230 = vsub.s32 2, %v229
    %v231 = vrot.slane %v218, %v230
    %v232 = vlaneseq
    %v233 = vshrl.u32 %v232, 7
    %v234 = vsub.s32 3, %v233
    %v235 = vrot.slane %v218, %v234
    %240 = vmatprep.subr.mxu0 %v151
    %241 = vmatpush1.msra.mxu0 %v150
    %242 = vmatprep.subr.mxu0 %v147
    %243 = vmatpush1.msra.mxu0 %v146
    %244 = vmatprep.subr.mxu0 %v143
    %245 = vmatpush1.msra.mxu0 %v142
    %246 = vmatprep.subr.mxu0 %v139
    %247 = vmatpush1.msra.mxu0 %v138
    %248 = vmatprep.subr.mxu0 %v135
    %249 = vmatpush1.msra.mxu0 %v134
    %250 = vmatprep.subr.mxu0 %v131
    %251 = vmatpush1.msra.mxu0 %v130
    %252 = vmatprep.subr.mxu0 %v127
    %253 = vmatpush1.msra.mxu0 %v126
    %254 = vmatprep.subr.mxu0 %v123
    %255 = vmatpush1.msra.mxu0 %v122
    %256 = vmatprep.subr.mxu0 %v119
    %257 = vmatpush1.msra.mxu0 %v118
    %258 = vmatprep.subr.mxu0 %v115
    %259 = vmatpush1.msra.mxu0 %v114
    %260 = vmatprep.subr.mxu0 %v111
    %261 = vmatpush1.msra.mxu0 %v110
    %262 = vmatprep.subr.mxu0 %v107
    %263 = vmatpush1.msra.mxu0 %v106
    %264 = vmatprep.subr.mxu0 %v103
    %265 = vmatpush1.msra.mxu0 %v102
    %266 = vmatprep.subr.mxu0 %v99
    %267 = vmatpush1.msra.mxu0 %v98
    %268 = vmatprep.subr.mxu0 %v95
    %269 = vmatpush1.msra.mxu0 %v94
    %270 = vmatprep.subr.mxu0 %v91
    %271 = vmatpush1.msra.mxu0 %v90
    %272 = vmatprep.subr.mxu0 %v215
    %273 = vmatpush2.msra.mxu0 %v214
    %274 = vmatprep.subr.mxu0 %v211
    %275 = vmatpush2.msra.mxu0 %v210
    %276 = vmatprep.subr.mxu0 %v207
    %277 = vmatpush2.msra.mxu0 %v206
    %278 = vmatprep.subr.mxu0 %v203
    %279 = vmatpush2.msra.mxu0 %v202
    %280 = vmatprep.subr.mxu0 %v199
    %281 = vmatpush2.msra.mxu0 %v198
    %282 = vmatprep.subr.mxu0 %v195
    %283 = vmatpush2.msra.mxu0 %v194
    %284 = vmatprep.subr.mxu0 %v191
    %285 = vmatpush2.msra.mxu0 %v190
    %286 = vmatprep.subr.mxu0 %v187
    %287 = vmatpush2.msra.mxu0 %v186
    %288 = vmatprep.subr.mxu0 %v183
    %289 = vmatpush2.msra.mxu0 %v182
    %290 = vmatprep.subr.mxu0 %v179
    %291 = vmatpush2.msra.mxu0 %v178
    %292 = vmatprep.subr.mxu0 %v175
    %293 = vmatpush2.msra.mxu0 %v174
    %294 = vmatprep.subr.mxu0 %v171
    %295 = vmatpush2.msra.mxu0 %v170
    %296 = vmatprep.subr.mxu0 %v167
    %297 = vmatpush2.msra.mxu0 %v166
    %298 = vmatprep.subr.mxu0 %v163
    %299 = vmatpush2.msra.mxu0 %v162
    %300 = vmatprep.subr.mxu0 %v159
    %301 = vmatpush2.msra.mxu0 %v158
    %302 = vmatprep.subr.mxu0 %v155
    %303 = vmatpush2.msra.mxu0 %v154
    %304 = vmatprep.mubr.f32.mxu0 %v75
    %305 = vmatmul.mubr.f32.gmra.mxu0 %v74
    %v306 = vpop.f32.mrf.mxu0
    %v307 = vadd.f32 %v223, %v306
    %v308 = vpop.f32.mrf.mxu0
    %v309 = vadd.f32 %v227, %v308
    %310 = vmatprep.mubr.f32.mxu0 %v77
    %311 = vmatmul.mubr.f32.gmra.mxu0 %v76
    %v312 = vpop.f32.mrf.mxu0
    %v313 = vadd.f32 %v223, %v312
    %v314 = vpop.f32.mrf.mxu0
    %v315 = vadd.f32 %v227, %v314
    %316 = vmatprep.mubr.f32.mxu0 %v79
    %317 = vmatmul.mubr.f32.gmra.mxu0 %v78
    %v318 = vpop.f32.mrf.mxu0
    %v319 = vadd.f32 %v223, %v318
    %v320 = vpop.f32.mrf.mxu0
    %v321 = vadd.f32 %v227, %v320
    %322 = vmatprep.mubr.f32.mxu0 %v81
    %323 = vmatmul.mubr.f32.gmra.mxu0 %v80
    %v324 = vpop.f32.mrf.mxu0
    %v325 = vadd.f32 %v223, %v324
    %v326 = vpop.f32.mrf.mxu0
    %v327 = vadd.f32 %v227, %v326
    %328 = vmatprep.mubr.f32.mxu0 %v83
    %329 = vmatmul.mubr.f32.gmra.mxu0 %v82
    %v330 = vpop.f32.mrf.mxu0
    %v331 = vadd.f32 %v223, %v330
    %v332 = vpop.f32.mrf.mxu0
    %v333 = vadd.f32 %v227, %v332
    %334 = vmatprep.mubr.f32.mxu0 %v85
    %335 = vmatmul.mubr.f32.gmra.mxu0 %v84
    %v336 = vpop.f32.mrf.mxu0
    %v337 = vadd.f32 %v223, %v336
    %v338 = vpop.f32.mrf.mxu0
    %v339 = vadd.f32 %v227, %v338
    %340 = vmatprep.mubr.f32.mxu0 %v87
    %341 = vmatmul.mubr.f32.gmra.mxu0 %v86
    %v342 = vpop.f32.mrf.mxu0
    %v343 = vadd.f32 %v223, %v342
    %v344 = vpop.f32.mrf.mxu0
    %v345 = vadd.f32 %v227, %v344
    %346 = vmatprep.mubr.f32.mxu0 %v89
    %347 = vmatmul.mubr.f32.gmra.mxu0 %v88
    %v348 = vpop.f32.mrf.mxu0
    %v349 = vadd.f32 %v223, %v348
    %v350 = vpop.f32.mrf.mxu0
    %v351 = vadd.f32 %v227, %v350
    %352 = vdwg.mxu0
    %353 = vmatprep.subr.mxu0 %v153
    %354 = vmatpush1.msra.mxu0 %v152
    %355 = vmatprep.subr.mxu0 %v149
    %356 = vmatpush1.msra.mxu0 %v148
    %357 = vmatprep.subr.mxu0 %v145
    %358 = vmatpush1.msra.mxu0 %v144
    %359 = vmatprep.subr.mxu0 %v141
    %360 = vmatpush1.msra.mxu0 %v140
    %361 = vmatprep.subr.mxu0 %v137
    %362 = vmatpush1.msra.mxu0 %v136
    %363 = vmatprep.subr.mxu0 %v133
    %364 = vmatpush1.msra.mxu0 %v132
    %365 = vmatprep.subr.mxu0 %v129
    %366 = vmatpush1.msra.mxu0 %v128
    %367 = vmatprep.subr.mxu0 %v125
    %368 = vmatpush1.msra.mxu0 %v124
    %369 = vmatprep.subr.mxu0 %v121
    %370 = vmatpush1.msra.mxu0 %v120
    %371 = vmatprep.subr.mxu0 %v117
    %372 = vmatpush1.msra.mxu0 %v116
    %373 = vmatprep.subr.mxu0 %v113
    %374 = vmatpush1.msra.mxu0 %v112
    %375 = vmatprep.subr.mxu0 %v109
    %376 = vmatpush1.msra.mxu0 %v108
    %377 = vmatprep.subr.mxu0 %v105
    %378 = vmatpush1.msra.mxu0 %v104
    %379 = vmatprep.subr.mxu0 %v101
    %380 = vmatpush1.msra.mxu0 %v100
    %381 = vmatprep.subr.mxu0 %v97
    %382 = vmatpush1.msra.mxu0 %v96
    %383 = vmatprep.subr.mxu0 %v93
    %384 = vmatpush1.msra.mxu0 %v92
    %385 = vmatprep.subr.mxu0 %v217
    %386 = vmatpush2.msra.mxu0 %v216
    %387 = vmatprep.subr.mxu0 %v213
    %388 = vmatpush2.msra.mxu0 %v212
    %389 = vmatprep.subr.mxu0 %v209
    %390 = vmatpush2.msra.mxu0 %v208
    %391 = vmatprep.subr.mxu0 %v205
    %392 = vmatpush2.msra.mxu0 %v204
    %393 = vmatprep.subr.mxu0 %v201
    %394 = vmatpush2.msra.mxu0 %v200
    %395 = vmatprep.subr.mxu0 %v197
    %396 = vmatpush2.msra.mxu0 %v196
    %397 = vmatprep.subr.mxu0 %v193
    %398 = vmatpush2.msra.mxu0 %v192
    %399 = vmatprep.subr.mxu0 %v189
    %400 = vmatpush2.msra.mxu0 %v188
    %401 = vmatprep.subr.mxu0 %v185
    %402 = vmatpush2.msra.mxu0 %v184
    %403 = vmatprep.subr.mxu0 %v181
    %404 = vmatpush2.msra.mxu0 %v180
    %405 = vmatprep.subr.mxu0 %v177
    %406 = vmatpush2.msra.mxu0 %v176
    %407 = vmatprep.subr.mxu0 %v173
    %408 = vmatpush2.msra.mxu0 %v172
    %409 = vmatprep.subr.mxu0 %v169
    %410 = vmatpush2.msra.mxu0 %v168
    %411 = vmatprep.subr.mxu0 %v165
    %412 = vmatpush2.msra.mxu0 %v164
    %413 = vmatprep.subr.mxu0 %v161
    %414 = vmatpush2.msra.mxu0 %v160
    %415 = vmatprep.subr.mxu0 %v157
    %416 = vmatpush2.msra.mxu0 %v156
    %417 = vmatprep.mubr.f32.mxu0 %v75
    %418 = vmatmul.mubr.f32.gmra.mxu0 %v74
    %v419 = vpop.f32.mrf.mxu0
    %v420 = vadd.f32 %v231, %v419
    %v421 = vpop.f32.mrf.mxu0
    %v422 = vadd.f32 %v235, %v421
    %423 = vmatprep.mubr.f32.mxu0 %v77
    %424 = vmatmul.mubr.f32.gmra.mxu0 %v76
    %v425 = vpop.f32.mrf.mxu0
    %v426 = vadd.f32 %v231, %v425
    %v427 = vpop.f32.mrf.mxu0
    %v428 = vadd.f32 %v235, %v427
    %429 = vmatprep.mubr.f32.mxu0 %v79
    %430 = vmatmul.mubr.f32.gmra.mxu0 %v78
    %v431 = vpop.f32.mrf.mxu0
    %v432 = vadd.f32 %v231, %v431
    %v433 = vpop.f32.mrf.mxu0
    %v434 = vadd.f32 %v235, %v433
    %435 = vmatprep.mubr.f32.mxu0 %v81
    %436 = vmatmul.mubr.f32.gmra.mxu0 %v80
    %v437 = vpop.f32.mrf.mxu0
    %v438 = vadd.f32 %v231, %v437
    %v439 = vpop.f32.mrf.mxu0
    %v440 = vadd.f32 %v235, %v439
    %441 = vmatprep.mubr.f32.mxu0 %v83
    %442 = vmatmul.mubr.f32.gmra.mxu0 %v82
    %v443 = vpop.f32.mrf.mxu0
    %v444 = vadd.f32 %v231, %v443
    %v445 = vpop.f32.mrf.mxu0
    %v446 = vadd.f32 %v235, %v445
    %447 = vmatprep.mubr.f32.mxu0 %v85
    %448 = vmatmul.mubr.f32.gmra.mxu0 %v84
    %v449 = vpop.f32.mrf.mxu0
    %v450 = vadd.f32 %v231, %v449
    %v451 = vpop.f32.mrf.mxu0
    %v452 = vadd.f32 %v235, %v451
    %453 = vmatprep.mubr.f32.mxu0 %v87
    %454 = vmatmul.mubr.f32.gmra.mxu0 %v86
    %v455 = vpop.f32.mrf.mxu0
    %v456 = vadd.f32 %v231, %v455
    %v457 = vpop.f32.mrf.mxu0
    %v458 = vadd.f32 %v235, %v457
    %459 = vmatprep.mubr.f32.mxu0 %v89
    %460 = vmatmul.mubr.f32.gmra.mxu0 %v88
    %v461 = vpop.f32.mrf.mxu0
    %v462 = vadd.f32 %v231, %v461
    %v463 = vpop.f32.mrf.mxu0
    %v464 = vadd.f32 %v235, %v463
    %465 = vdwg.mxu0
    %v466 = vld [vmem:[#allocation8] sm:$0xff]
    %v467 = vld [vmem:[#allocation8 + $0x8] sm:$0xff]
    %v468 = vld [vmem:[#allocation8 + $0x10] sm:$0xff]
    %v469 = vld [vmem:[#allocation8 + $0x18] sm:$0xff]
    %v470 = vld [vmem:[#allocation8 + $0x20] sm:$0xff]
    %v471 = vld [vmem:[#allocation8 + $0x28] sm:$0xff]
    %v472 = vld [vmem:[#allocation8 + $0x30] sm:$0xff]
    %v473 = vld [vmem:[#allocation8 + $0x38] sm:$0xff]
    %v474 = vld [vmem:[#allocation8 + $0x40] sm:$0xff]
    %v475 = vld [vmem:[#allocation8 + $0x48] sm:$0xff]
    %v476 = vld [vmem:[#allocation8 + $0x50] sm:$0xff]
    %v477 = vld [vmem:[#allocation8 + $0x58] sm:$0xff]
    %v478 = vld [vmem:[#allocation8 + $0x60] sm:$0xff]
    %v479 = vld [vmem:[#allocation8 + $0x68] sm:$0xff]
    %v480 = vld [vmem:[#allocation8 + $0x70] sm:$0xff]
    %v481 = vld [vmem:[#allocation8 + $0x78] sm:$0xff]
    %v482 = vld [vmem:[#allocation8 + $0x80] sm:$0xff]
    %v483 = vld [vmem:[#allocation8 + $0x88] sm:$0xff]
    %v484 = vld [vmem:[#allocation8 + $0x90] sm:$0xff]
    %v485 = vld [vmem:[#allocation8 + $0x98] sm:$0xff]
    %v486 = vld [vmem:[#allocation8 + $0xa0] sm:$0xff]
    %v487 = vld [vmem:[#allocation8 + $0xa8] sm:$0xff]
    %v488 = vld [vmem:[#allocation8 + $0xb0] sm:$0xff]
    %v489 = vld [vmem:[#allocation8 + $0xb8] sm:$0xff]
    %v490 = vld [vmem:[#allocation8 + $0xc0] sm:$0xff]
    %v491 = vld [vmem:[#allocation8 + $0xc8] sm:$0xff]
    %v492 = vld [vmem:[#allocation8 + $0xd0] sm:$0xff]
    %v493 = vld [vmem:[#allocation8 + $0xd8] sm:$0xff]
    %v494 = vld [vmem:[#allocation8 + $0xe0] sm:$0xff]
    %v495 = vld [vmem:[#allocation8 + $0xe8] sm:$0xff]
    %v496 = vld [vmem:[#allocation8 + $0xf0] sm:$0xff]
    %v497 = vld [vmem:[#allocation8 + $0xf8] sm:$0xff]
    %v498 = vld [vmem:[#allocation8 + $0x100] sm:$0xff]
    %v499 = vld [vmem:[#allocation8 + $0x108] sm:$0xff]
    %v500 = vld [vmem:[#allocation8 + $0x110] sm:$0xff]
    %v501 = vld [vmem:[#allocation8 + $0x118] sm:$0xff]
    %v502 = vld [vmem:[#allocation8 + $0x120] sm:$0xff]
    %v503 = vld [vmem:[#allocation8 + $0x128] sm:$0xff]
    %v504 = vld [vmem:[#allocation8 + $0x130] sm:$0xff]
    %v505 = vld [vmem:[#allocation8 + $0x138] sm:$0xff]
    %v506 = vld [vmem:[#allocation8 + $0x140] sm:$0xff]
    %v507 = vld [vmem:[#allocation8 + $0x148] sm:$0xff]
    %v508 = vld [vmem:[#allocation8 + $0x150] sm:$0xff]
    %v509 = vld [vmem:[#allocation8 + $0x158] sm:$0xff]
    %v510 = vld [vmem:[#allocation8 + $0x160] sm:$0xff]
    %v511 = vld [vmem:[#allocation8 + $0x168] sm:$0xff]
    %v512 = vld [vmem:[#allocation8 + $0x170] sm:$0xff]
    %v513 = vld [vmem:[#allocation8 + $0x178] sm:$0xff]
    %v514 = vld [vmem:[#allocation8 + $0x180] sm:$0xff]
    %v515 = vld [vmem:[#allocation8 + $0x188] sm:$0xff]
    %v516 = vld [vmem:[#allocation8 + $0x190] sm:$0xff]
    %v517 = vld [vmem:[#allocation8 + $0x198] sm:$0xff]
    %v518 = vld [vmem:[#allocation8 + $0x1a0] sm:$0xff]
    %v519 = vld [vmem:[#allocation8 + $0x1a8] sm:$0xff]
    %v520 = vld [vmem:[#allocation8 + $0x1b0] sm:$0xff]
    %v521 = vld [vmem:[#allocation8 + $0x1b8] sm:$0xff]
    %v522 = vld [vmem:[#allocation8 + $0x1c0] sm:$0xff]
    %v523 = vld [vmem:[#allocation8 + $0x1c8] sm:$0xff]
    %v524 = vld [vmem:[#allocation8 + $0x1d0] sm:$0xff]
    %v525 = vld [vmem:[#allocation8 + $0x1d8] sm:$0xff]
    %v526 = vld [vmem:[#allocation8 + $0x1e0] sm:$0xff]
    %v527 = vld [vmem:[#allocation8 + $0x1e8] sm:$0xff]
    %v528 = vld [vmem:[#allocation8 + $0x1f0] sm:$0xff]
    %v529 = vld [vmem:[#allocation8 + $0x1f8] sm:$0xff]
    %v530 = vld [vmem:[#allocation8 + $0x200] sm:$0xff]
    %v531 = vld [vmem:[#allocation8 + $0x208] sm:$0xff]
    %v532 = vld [vmem:[#allocation8 + $0x210] sm:$0xff]
    %v533 = vld [vmem:[#allocation8 + $0x218] sm:$0xff]
    %v534 = vld [vmem:[#allocation8 + $0x220] sm:$0xff]
    %v535 = vld [vmem:[#allocation8 + $0x228] sm:$0xff]
    %v536 = vld [vmem:[#allocation8 + $0x230] sm:$0xff]
    %v537 = vld [vmem:[#allocation8 + $0x238] sm:$0xff]
    %v538 = vld [vmem:[#allocation8 + $0x240] sm:$0xff]
    %v539 = vld [vmem:[#allocation8 + $0x248] sm:$0xff]
    %v540 = vld [vmem:[#allocation8 + $0x250] sm:$0xff]
    %v541 = vld [vmem:[#allocation8 + $0x258] sm:$0xff]
    %v542 = vld [vmem:[#allocation8 + $0x260] sm:$0xff]
    %v543 = vld [vmem:[#allocation8 + $0x268] sm:$0xff]
    %v544 = vld [vmem:[#allocation8 + $0x270] sm:$0xff]
    %v545 = vld [vmem:[#allocation8 + $0x278] sm:$0xff]
    %v546 = vld [vmem:[#allocation8 + $0x280] sm:$0xff]
    %v547 = vld [vmem:[#allocation8 + $0x288] sm:$0xff]
    %v548 = vld [vmem:[#allocation8 + $0x290] sm:$0xff]
    %v549 = vld [vmem:[#allocation8 + $0x298] sm:$0xff]
    %v550 = vld [vmem:[#allocation8 + $0x2a0] sm:$0xff]
    %v551 = vld [vmem:[#allocation8 + $0x2a8] sm:$0xff]
    %v552 = vld [vmem:[#allocation8 + $0x2b0] sm:$0xff]
    %v553 = vld [vmem:[#allocation8 + $0x2b8] sm:$0xff]
    %v554 = vld [vmem:[#allocation8 + $0x2c0] sm:$0xff]
    %v555 = vld [vmem:[#allocation8 + $0x2c8] sm:$0xff]
    %v556 = vld [vmem:[#allocation8 + $0x2d0] sm:$0xff]
    %v557 = vld [vmem:[#allocation8 + $0x2d8] sm:$0xff]
    %v558 = vld [vmem:[#allocation8 + $0x2e0] sm:$0xff]
    %v559 = vld [vmem:[#allocation8 + $0x2e8] sm:$0xff]
    %v560 = vld [vmem:[#allocation8 + $0x2f0] sm:$0xff]
    %v561 = vld [vmem:[#allocation8 + $0x2f8] sm:$0xff]
    %v562 = vld [vmem:[#allocation8 + $0x300] sm:$0xff]
    %v563 = vld [vmem:[#allocation8 + $0x308] sm:$0xff]
    %v564 = vld [vmem:[#allocation8 + $0x310] sm:$0xff]
    %v565 = vld [vmem:[#allocation8 + $0x318] sm:$0xff]
    %v566 = vld [vmem:[#allocation8 + $0x320] sm:$0xff]
    %v567 = vld [vmem:[#allocation8 + $0x328] sm:$0xff]
    %v568 = vld [vmem:[#allocation8 + $0x330] sm:$0xff]
    %v569 = vld [vmem:[#allocation8 + $0x338] sm:$0xff]
    %v570 = vld [vmem:[#allocation8 + $0x340] sm:$0xff]
    %v571 = vld [vmem:[#allocation8 + $0x348] sm:$0xff]
    %v572 = vld [vmem:[#allocation8 + $0x350] sm:$0xff]
    %v573 = vld [vmem:[#allocation8 + $0x358] sm:$0xff]
    %v574 = vld [vmem:[#allocation8 + $0x360] sm:$0xff]
    %v575 = vld [vmem:[#allocation8 + $0x368] sm:$0xff]
    %v576 = vld [vmem:[#allocation8 + $0x370] sm:$0xff]
    %v577 = vld [vmem:[#allocation8 + $0x378] sm:$0xff]
    %v578 = vld [vmem:[#allocation8 + $0x380] sm:$0xff]
    %v579 = vld [vmem:[#allocation8 + $0x388] sm:$0xff]
    %v580 = vld [vmem:[#allocation8 + $0x390] sm:$0xff]
    %v581 = vld [vmem:[#allocation8 + $0x398] sm:$0xff]
    %v582 = vld [vmem:[#allocation8 + $0x3a0] sm:$0xff]
    %v583 = vld [vmem:[#allocation8 + $0x3a8] sm:$0xff]
    %v584 = vld [vmem:[#allocation8 + $0x3b0] sm:$0xff]
    %v585 = vld [vmem:[#allocation8 + $0x3b8] sm:$0xff]
    %v586 = vld [vmem:[#allocation8 + $0x3c0] sm:$0xff]
    %v587 = vld [vmem:[#allocation8 + $0x3c8] sm:$0xff]
    %v588 = vld [vmem:[#allocation8 + $0x3d0] sm:$0xff]
    %v589 = vld [vmem:[#allocation8 + $0x3d8] sm:$0xff]
    %v590 = vld [vmem:[#allocation8 + $0x3e0] sm:$0xff]
    %v591 = vld [vmem:[#allocation8 + $0x3e8] sm:$0xff]
    %v592 = vld [vmem:[#allocation8 + $0x3f0] sm:$0xff]
    %v593 = vld [vmem:[#allocation8 + $0x3f8] sm:$0xff]
    %v594 = vld [vmem:[%s4] sm:$0x3]
    %v596 = vlaneseq
    %v597 = vshrl.u32 %v596, 7
    %v598 = vsub.s32 0, %v597
    %v599 = vrot.slane %v594, %v598
    %v600 = vlaneseq
    %v601 = vshrl.u32 %v600, 7
    %v602 = vsub.s32 1, %v601
    %v603 = vrot.slane %v594, %v602
    %606 = vmatprep.subr.mxu0 %v497
    %607 = vmatpush1.msra.mxu0 %v496
    %608 = vmatprep.subr.mxu0 %v495
    %609 = vmatpush1.msra.mxu0 %v494
    %610 = vmatprep.subr.mxu0 %v493
    %611 = vmatpush1.msra.mxu0 %v492
    %612 = vmatprep.subr.mxu0 %v491
    %613 = vmatpush1.msra.mxu0 %v490
    %614 = vmatprep.subr.mxu0 %v489
    %615 = vmatpush1.msra.mxu0 %v488
    %616 = vmatprep.subr.mxu0 %v487
    %617 = vmatpush1.msra.mxu0 %v486
    %618 = vmatprep.subr.mxu0 %v485
    %619 = vmatpush1.msra.mxu0 %v484
    %620 = vmatprep.subr.mxu0 %v483
    %621 = vmatpush1.msra.mxu0 %v482
    %622 = vmatprep.subr.mxu0 %v481
    %623 = vmatpush1.msra.mxu0 %v480
    %624 = vmatprep.subr.mxu0 %v479
    %625 = vmatpush1.msra.mxu0 %v478
    %626 = vmatprep.subr.mxu0 %v477
    %627 = vmatpush1.msra.mxu0 %v476
    %628 = vmatprep.subr.mxu0 %v475
    %629 = vmatpush1.msra.mxu0 %v474
    %630 = vmatprep.subr.mxu0 %v473
    %631 = vmatpush1.msra.mxu0 %v472
    %632 = vmatprep.subr.mxu0 %v471
    %633 = vmatpush1.msra.mxu0 %v470
    %634 = vmatprep.subr.mxu0 %v469
    %635 = vmatpush1.msra.mxu0 %v468
    %636 = vmatprep.subr.mxu0 %v467
    %637 = vmatpush1.msra.mxu0 %v466
    %638 = vmatprep.subr.mxu0 %v529
    %639 = vmatpush2.msra.mxu0 %v528
    %640 = vmatprep.subr.mxu0 %v527
    %641 = vmatpush2.msra.mxu0 %v526
    %642 = vmatprep.subr.mxu0 %v525
    %643 = vmatpush2.msra.mxu0 %v524
    %644 = vmatprep.subr.mxu0 %v523
    %645 = vmatpush2.msra.mxu0 %v522
    %646 = vmatprep.subr.mxu0 %v521
    %647 = vmatpush2.msra.mxu0 %v520
    %648 = vmatprep.subr.mxu0 %v519
    %649 = vmatpush2.msra.mxu0 %v518
    %650 = vmatprep.subr.mxu0 %v517
    %651 = vmatpush2.msra.mxu0 %v516
    %652 = vmatprep.subr.mxu0 %v515
    %653 = vmatpush2.msra.mxu0 %v514
    %654 = vmatprep.subr.mxu0 %v513
    %655 = vmatpush2.msra.mxu0 %v512
    %656 = vmatprep.subr.mxu0 %v511
    %657 = vmatpush2.msra.mxu0 %v510
    %658 = vmatprep.subr.mxu0 %v509
    %659 = vmatpush2.msra.mxu0 %v508
    %660 = vmatprep.subr.mxu0 %v507
    %661 = vmatpush2.msra.mxu0 %v506
    %662 = vmatprep.subr.mxu0 %v505
    %663 = vmatpush2.msra.mxu0 %v504
    %664 = vmatprep.subr.mxu0 %v503
    %665 = vmatpush2.msra.mxu0 %v502
    %666 = vmatprep.subr.mxu0 %v501
    %667 = vmatpush2.msra.mxu0 %v500
    %668 = vmatprep.subr.mxu0 %v499
    %669 = vmatpush2.msra.mxu0 %v498
    %670 = vmatprep.mubr.f32.mxu0 %v309
    %671 = vmatmul.mubr.f32.gmra.mxu0 %v307
    %v672 = vpop.f32.mrf.mxu0
    %v673 = vadd.f32 %v599, %v672
    %v674 = vpop.f32.mrf.mxu0
    %v675 = vadd.f32 %v603, %v674
    %676 = vmatprep.mubr.f32.mxu0 %v315
    %677 = vmatmul.mubr.f32.gmra.mxu0 %v313
    %v678 = vpop.f32.mrf.mxu0
    %v679 = vadd.f32 %v599, %v678
    %v680 = vpop.f32.mrf.mxu0
    %v681 = vadd.f32 %v603, %v680
    %682 = vmatprep.mubr.f32.mxu0 %v321
    %683 = vmatmul.mubr.f32.gmra.mxu0 %v319
    %v684 = vpop.f32.mrf.mxu0
    %v685 = vadd.f32 %v599, %v684
    %v686 = vpop.f32.mrf.mxu0
    %v687 = vadd.f32 %v603, %v686
    %688 = vmatprep.mubr.f32.mxu0 %v327
    %689 = vmatmul.mubr.f32.gmra.mxu0 %v325
    %v690 = vpop.f32.mrf.mxu0
    %v691 = vadd.f32 %v599, %v690
    %v692 = vpop.f32.mrf.mxu0
    %v693 = vadd.f32 %v603, %v692
    %694 = vmatprep.mubr.f32.mxu0 %v333
    %695 = vmatmul.mubr.f32.gmra.mxu0 %v331
    %v696 = vpop.f32.mrf.mxu0
    %v697 = vadd.f32 %v599, %v696
    %v698 = vpop.f32.mrf.mxu0
    %v699 = vadd.f32 %v603, %v698
    %700 = vmatprep.mubr.f32.mxu0 %v339
    %701 = vmatmul.mubr.f32.gmra.mxu0 %v337
    %v702 = vpop.f32.mrf.mxu0
    %v703 = vadd.f32 %v599, %v702
    %v704 = vpop.f32.mrf.mxu0
    %v705 = vadd.f32 %v603, %v704
    %706 = vmatprep.mubr.f32.mxu0 %v345
    %707 = vmatmul.mubr.f32.gmra.mxu0 %v343
    %v708 = vpop.f32.mrf.mxu0
    %v709 = vadd.f32 %v599, %v708
    %v710 = vpop.f32.mrf.mxu0
    %v711 = vadd.f32 %v603, %v710
    %712 = vmatprep.mubr.f32.mxu0 %v351
    %713 = vmatmul.mubr.f32.gmra.mxu0 %v349
    %v714 = vpop.f32.mrf.mxu0
    %v715 = vadd.f32 %v599, %v714
    %v716 = vpop.f32.mrf.mxu0
    %v717 = vadd.f32 %v603, %v716
    %718 = vdwg.mxu0
    %719 = vmatprep.subr.mxu0 %v561
    %720 = vmatpush1.msra.mxu0 %v560
    %721 = vmatprep.subr.mxu0 %v559
    %722 = vmatpush1.msra.mxu0 %v558
    %723 = vmatprep.subr.mxu0 %v557
    %724 = vmatpush1.msra.mxu0 %v556
    %725 = vmatprep.subr.mxu0 %v555
    %726 = vmatpush1.msra.mxu0 %v554
    %727 = vmatprep.subr.mxu0 %v553
    %728 = vmatpush1.msra.mxu0 %v552
    %729 = vmatprep.subr.mxu0 %v551
    %730 = vmatpush1.msra.mxu0 %v550
    %731 = vmatprep.subr.mxu0 %v549
    %732 = vmatpush1.msra.mxu0 %v548
    %733 = vmatprep.subr.mxu0 %v547
    %734 = vmatpush1.msra.mxu0 %v546
    %735 = vmatprep.subr.mxu0 %v545
    %736 = vmatpush1.msra.mxu0 %v544
    %737 = vmatprep.subr.mxu0 %v543
    %738 = vmatpush1.msra.mxu0 %v542
    %739 = vmatprep.subr.mxu0 %v541
    %740 = vmatpush1.msra.mxu0 %v540
    %741 = vmatprep.subr.mxu0 %v539
    %742 = vmatpush1.msra.mxu0 %v538
    %743 = vmatprep.subr.mxu0 %v537
    %744 = vmatpush1.msra.mxu0 %v536
    %745 = vmatprep.subr.mxu0 %v535
    %746 = vmatpush1.msra.mxu0 %v534
    %747 = vmatprep.subr.mxu0 %v533
    %748 = vmatpush1.msra.mxu0 %v532
    %749 = vmatprep.subr.mxu0 %v531
    %750 = vmatpush1.msra.mxu0 %v530
    %751 = vmatprep.subr.mxu0 %v593
    %752 = vmatpush2.msra.mxu0 %v592
    %753 = vmatprep.subr.mxu0 %v591
    %754 = vmatpush2.msra.mxu0 %v590
    %755 = vmatprep.subr.mxu0 %v589
    %756 = vmatpush2.msra.mxu0 %v588
    %757 = vmatprep.subr.mxu0 %v587
    %758 = vmatpush2.msra.mxu0 %v586
    %759 = vmatprep.subr.mxu0 %v585
    %760 = vmatpush2.msra.mxu0 %v584
    %761 = vmatprep.subr.mxu0 %v583
    %762 = vmatpush2.msra.mxu0 %v582
    %763 = vmatprep.subr.mxu0 %v581
    %764 = vmatpush2.msra.mxu0 %v580
    %765 = vmatprep.subr.mxu0 %v579
    %766 = vmatpush2.msra.mxu0 %v578
    %767 = vmatprep.subr.mxu0 %v577
    %768 = vmatpush2.msra.mxu0 %v576
    %769 = vmatprep.subr.mxu0 %v575
    %770 = vmatpush2.msra.mxu0 %v574
    %771 = vmatprep.subr.mxu0 %v573
    %772 = vmatpush2.msra.mxu0 %v572
    %773 = vmatprep.subr.mxu0 %v571
    %774 = vmatpush2.msra.mxu0 %v570
    %775 = vmatprep.subr.mxu0 %v569
    %776 = vmatpush2.msra.mxu0 %v568
    %777 = vmatprep.subr.mxu0 %v567
    %778 = vmatpush2.msra.mxu0 %v566
    %779 = vmatprep.subr.mxu0 %v565
    %780 = vmatpush2.msra.mxu0 %v564
    %781 = vmatprep.subr.mxu0 %v563
    %782 = vmatpush2.msra.mxu0 %v562
    %783 = vmatprep.mubr.f32.mxu0 %v422
    %784 = vmatmul.mubr.f32.gmra.mxu0 %v420
    %v785 = vpop.f32.mrf.mxu0
    %v786 = vadd.f32 %v673, %v785
    %v787 = vpop.f32.mrf.mxu0
    %v788 = vadd.f32 %v675, %v787
    %789 = vmatprep.mubr.f32.mxu0 %v428
    %790 = vmatmul.mubr.f32.gmra.mxu0 %v426
    %v791 = vpop.f32.mrf.mxu0
    %v792 = vadd.f32 %v679, %v791
    %v793 = vpop.f32.mrf.mxu0
    %v794 = vadd.f32 %v681, %v793
    %795 = vmatprep.mubr.f32.mxu0 %v434
    %796 = vmatmul.mubr.f32.gmra.mxu0 %v432
    %v797 = vpop.f32.mrf.mxu0
    %v798 = vadd.f32 %v685, %v797
    %v799 = vpop.f32.mrf.mxu0
    %v800 = vadd.f32 %v687, %v799
    %801 = vmatprep.mubr.f32.mxu0 %v440
    %802 = vmatmul.mubr.f32.gmra.mxu0 %v438
    %v803 = vpop.f32.mrf.mxu0
    %v804 = vadd.f32 %v691, %v803
    %v805 = vpop.f32.mrf.mxu0
    %v806 = vadd.f32 %v693, %v805
    %807 = vmatprep.mubr.f32.mxu0 %v446
    %808 = vmatmul.mubr.f32.gmra.mxu0 %v444
    %v809 = vpop.f32.mrf.mxu0
    %v810 = vadd.f32 %v697, %v809
    %v811 = vpop.f32.mrf.mxu0
    %v812 = vadd.f32 %v699, %v811
    %813 = vmatprep.mubr.f32.mxu0 %v452
    %814 = vmatmul.mubr.f32.gmra.mxu0 %v450
    %v815 = vpop.f32.mrf.mxu0
    %v816 = vadd.f32 %v703, %v815
    %v817 = vpop.f32.mrf.mxu0
    %v818 = vadd.f32 %v705, %v817
    %819 = vmatprep.mubr.f32.mxu0 %v458
    %820 = vmatmul.mubr.f32.gmra.mxu0 %v456
    %v821 = vpop.f32.mrf.mxu0
    %v822 = vadd.f32 %v709, %v821
    %v823 = vpop.f32.mrf.mxu0
    %v824 = vadd.f32 %v711, %v823
    %825 = vmatprep.mubr.f32.mxu0 %v464
    %826 = vmatmul.mubr.f32.gmra.mxu0 %v462
    %v827 = vpop.f32.mrf.mxu0
    %v828 = vadd.f32 %v715, %v827
    %v829 = vpop.f32.mrf.mxu0
    %v830 = vadd.f32 %v717, %v829
    %831 = vdwg.mxu0
    %v832 = vxor.u32 %v786, 2147483648
    %v833 = vxor.u32 %v788, 2147483648
    %v834 = vxor.u32 %v792, 2147483648
    %v835 = vxor.u32 %v794, 2147483648
    %v836 = vxor.u32 %v798, 2147483648
    %v837 = vxor.u32 %v800, 2147483648
    %v838 = vxor.u32 %v804, 2147483648
    %v839 = vxor.u32 %v806, 2147483648
    %v840 = vxor.u32 %v810, 2147483648
    %v841 = vxor.u32 %v812, 2147483648
    %v842 = vxor.u32 %v816, 2147483648
    %v843 = vxor.u32 %v818, 2147483648
    %v844 = vxor.u32 %v822, 2147483648
    %v845 = vxor.u32 %v824, 2147483648
    %v846 = vxor.u32 %v828, 2147483648
    %v847 = vxor.u32 %v830, 2147483648
    %v848 = vmul.f32 %v832, 1.442695
    %v849 = vpow.pop %v848
    %v850 = vmul.f32 %v833, 1.442695
    %v851 = vpow.pop %v850
    %v852 = vmul.f32 %v834, 1.442695
    %v853 = vpow.pop %v852
    %v854 = vmul.f32 %v835, 1.442695
    %v855 = vpow.pop %v854
    %v856 = vmul.f32 %v836, 1.442695
    %v857 = vpow.pop %v856
    %v858 = vmul.f32 %v837, 1.442695
    %v859 = vpow.pop %v858
    %v860 = vmul.f32 %v838, 1.442695
    %v861 = vpow.pop %v860
    %v862 = vmul.f32 %v839, 1.442695
    %v863 = vpow.pop %v862
    %v864 = vmul.f32 %v840, 1.442695
    %v865 = vpow.pop %v864
    %v866 = vmul.f32 %v841, 1.442695
    %v867 = vpow.pop %v866
    %v868 = vmul.f32 %v842, 1.442695
    %v869 = vpow.pop %v868
    %v870 = vmul.f32 %v843, 1.442695
    %v871 = vpow.pop %v870
    %v872 = vmul.f32 %v844, 1.442695
    %v873 = vpow.pop %v872
    %v874 = vmul.f32 %v845, 1.442695
    %v875 = vpow.pop %v874
    %v876 = vmul.f32 %v846, 1.442695
    %v877 = vpow.pop %v876
    %v878 = vmul.f32 %v847, 1.442695
    %v879 = vpow.pop %v878
    %v880 = vadd.f32 %v849, 1.0
    %v881 = vadd.f32 %v851, 1.0
    %v882 = vadd.f32 %v853, 1.0
    %v883 = vadd.f32 %v855, 1.0
    %v884 = vadd.f32 %v857, 1.0
    %v885 = vadd.f32 %v859, 1.0
    %v886 = vadd.f32 %v861, 1.0
    %v887 = vadd.f32 %v863, 1.0
    %v888 = vadd.f32 %v865, 1.0
    %v889 = vadd.f32 %v867, 1.0
    %v890 = vadd.f32 %v869, 1.0
    %v891 = vadd.f32 %v871, 1.0
    %v892 = vadd.f32 %v873, 1.0
    %v893 = vadd.f32 %v875, 1.0
    %v894 = vadd.f32 %v877, 1.0
    %v895 = vadd.f32 %v879, 1.0
    %v896 = vrcp.pop %v880
    %v897 = vmul.f32 1.0, %v896
    %v898 = vrcp.pop %v881
    %v899 = vmul.f32 1.0, %v898
    %v900 = vrcp.pop %v882
    %v901 = vmul.f32 1.0, %v900
    %v902 = vrcp.pop %v883
    %v903 = vmul.f32 1.0, %v902
    %v904 = vrcp.pop %v884
    %v905 = vmul.f32 1.0, %v904
    %v906 = vrcp.pop %v885
    %v907 = vmul.f32 1.0, %v906
    %v908 = vrcp.pop %v886
    %v909 = vmul.f32 1.0, %v908
    %v910 = vrcp.pop %v887
    %v911 = vmul.f32 1.0, %v910
    %v912 = vrcp.pop %v888
    %v913 = vmul.f32 1.0, %v912
    %v914 = vrcp.pop %v889
    %v915 = vmul.f32 1.0, %v914
    %v916 = vrcp.pop %v890
    %v917 = vmul.f32 1.0, %v916
    %v918 = vrcp.pop %v891
    %v919 = vmul.f32 1.0, %v918
    %v920 = vrcp.pop %v892
    %v921 = vmul.f32 1.0, %v920
    %v922 = vrcp.pop %v893
    %v923 = vmul.f32 1.0, %v922
    %v924 = vrcp.pop %v894
    %v925 = vmul.f32 1.0, %v924
    %v926 = vrcp.pop %v895
    %v927 = vmul.f32 1.0, %v926
    %928 = vst [vmem:[#allocation10] sm:$0xff] %v897
    %929 = vst [vmem:[#allocation10 + $0x8] sm:$0xff] %v899
    %930 = vst [vmem:[#allocation10 + $0x10] sm:$0xff] %v901
    %931 = vst [vmem:[#allocation10 + $0x18] sm:$0xff] %v903
    %932 = vst [vmem:[#allocation10 + $0x20] sm:$0xff] %v905
    %933 = vst [vmem:[#allocation10 + $0x28] sm:$0xff] %v907
    %934 = vst [vmem:[#allocation10 + $0x30] sm:$0xff] %v909
    %935 = vst [vmem:[#allocation10 + $0x38] sm:$0xff] %v911
    %936 = vst [vmem:[#allocation10 + $0x40] sm:$0xff] %v913
    %937 = vst [vmem:[#allocation10 + $0x48] sm:$0xff] %v915
    %938 = vst [vmem:[#allocation10 + $0x50] sm:$0xff] %v917
    %939 = vst [vmem:[#allocation10 + $0x58] sm:$0xff] %v919
    %940 = vst [vmem:[#allocation10 + $0x60] sm:$0xff] %v921
    %941 = vst [vmem:[#allocation10 + $0x68] sm:$0xff] %v923
    %942 = vst [vmem:[#allocation10 + $0x70] sm:$0xff] %v925
    %943 = vst [vmem:[#allocation10 + $0x78] sm:$0xff] %v927
    // Predicated region
    $region38: #{tpu_custom_call.1} parent=1 // pred_check
      _
    $region39: #{tpu_custom_call.1} parent=1 // pred_check_branch
      %945 = sbr.rel (0) target = $region41
    $region40: #{tpu_custom_call.1} parent=1 // pred_region
      %s947 = ssub.s32 2048, 2048
      %948 = vsyncadd [#allocation4], %s947
      %s949 = sshll.u32 [#allocation10], 4
      %s950 = int_to_ptr.vmem [resolvable:$true] %s949
      %955 = dma.vmem_to_hbm [thread:$0]  %s950, 2048, %s5, [#allocation4], 256, 256, 16
    $region41: #{tpu_custom_call.1} parent=1 // pred_fallthru
      _
    // Predicated region
    $region42: #{tpu_custom_call.1} parent=1 // pred_check
      _
    $region43: #{tpu_custom_call.1} parent=1 // pred_check_branch
      %957 = sbr.rel (0) target = $region45
    $region44: #{tpu_custom_call.1} parent=1 // pred_region
      %958 = dma.done [#allocation4], 2048
    $region45: #{tpu_custom_call.1} parent=1 // pred_fallthru
      _
    %959 = vsyncpa [#allocation3], 1
    %960 = vsyncpa [#allocation6], 1
    %961 = vsyncpa [#allocation9], 1
    %962 = vsyncpa [#allocation4], 1

</llo_original>
